<compile_context>
chip_gen: v5e
topology: v5e:2x2
jax: 0.10.0
libtpu: 0.0.40
codegen_flags: <defaults>
</compile_context>

<pallas_src>
import functools

import jax
import jax.numpy as jnp
from jax.experimental import pallas as pl
from jax.experimental.pallas import tpu as pltpu


def _vpu_kernel(c_in, c_out, t_n, x_ref, w_ref, b_ref, o_ref):
    """Small-channel path: unrolled VPU broadcast-MAC with SMEM scalar weights.

    x_ref: (t_n, C_in, hw_blk) VMEM, native dtype
    w_ref: (C_out * C_in,)     SMEM, f32
    b_ref: (C_out,)            SMEM, f32
    o_ref: (t_n, C_out, hw_blk) VMEM
    """
    for n in range(t_n):
        x = x_ref[n]                                   # (C_in, hw_blk)
        rows = []
        for o in range(c_out):
            acc = jnp.zeros((1, x.shape[-1]), jnp.float32)
            for c in range(c_in):
                # scalar splat (SMEM) * per-slice cast -> f32 accumulate
                acc = acc + w_ref[o * c_in + c] * x[c:c + 1, :].astype(jnp.float32)
            rows.append(acc + b_ref[o])
        o_ref[n] = jnp.concatenate(rows, axis=0).astype(o_ref.dtype)


def _mxu_kernel(t_n, x_ref, w_ref, b_ref, o_ref):
    """Large-channel path: MXU matmul with f32 accumulation.

    x_ref: (t_n, C_in, hw_blk) VMEM   w_ref: (C_out, C_in) VMEM
    b_ref: (C_out, 1) VMEM f32        o_ref: (t_n, C_out, hw_blk) VMEM
    """
    for n in range(t_n):
        acc = jnp.dot(w_ref[...], x_ref[n], preferred_element_type=jnp.float32)
        o_ref[n] = (acc + b_ref[...]).astype(o_ref.dtype)


def outconv(x_nchw, weight, bias):
    """1x1 conv, NCHW in / NCHW out (matches nn.Conv2d(kernel_size=1)).

    weight: (C_out, C_in, 1, 1) torch layout; bias: (C_out,).
    """
    N, C_in, H, W = x_nchw.shape
    C_out = weight.shape[0]
    HW = H * W
    dtype = x_nchw.dtype
    itemsize = jnp.dtype(dtype).itemsize

    use_vpu = (C_in <= 8 and C_out <= 8)

    # ---- spatial block -----------------------------------------------------
    hw_aligned = pl.cdiv(HW, 128) * 128
    if use_vpu:
        # keep the (C_out, hw_blk) f32 accumulator + x tile well inside 64 vregs
        hw_cap = 2048
    else:
        # channel-aware cap: ~<= 8 MiB per step with double buffering
        ch = (pl.cdiv(C_in, 8) * 8 + pl.cdiv(C_out, 8) * 8)
        hw_cap = max(512, min(8192, (4 * 1024 * 1024) // max(1, ch * itemsize)))
        hw_cap = max(128, (hw_cap // 128) * 128)

    if hw_aligned <= hw_cap:
        # Whole spatial extent in one block; block dim == full array dim is
        # always legal (even when not a multiple of 128) -> no pad, no slice.
        hw_blk = HW
    else:
        hw_blk = hw_cap                   # 128-multiple; last block is ragged
    hw_blocks = pl.cdiv(HW, hw_blk)

    # ---- batch block ---------------------------------------------------------
    if hw_blocks == 1:
        t_n = max(1, min(N, hw_cap // max(1, hw_blk)))
        if N >= 2:
            # keep >= 2 grid steps so v7x's two TensorCores both get work
            t_n = min(t_n, max(1, N // 2))
        while N % t_n != 0:               # avoid ragged batch blocks
            t_n -= 1
    else:
        t_n = 1
    n_blocks = N // t_n

    x3d = x_nchw.reshape(N, C_in, HW)

    cost = pl.CostEstimate(
        flops=2 * N * HW * C_in * C_out,
        transcendentals=0,
        bytes_accessed=(N * C_in * HW + N * C_out * HW) * itemsize
        + (C_in * C_out + C_out) * 4,
    )

    x_spec = pl.BlockSpec((t_n, C_in, hw_blk), lambda i, j: (i, 0, j))
    o_spec = pl.BlockSpec((t_n, C_out, hw_blk), lambda i, j: (i, 0, j))

    if use_vpu:
        kernel = functools.partial(_vpu_kernel, C_in, C_out, t_n)
        w_arg = weight.reshape(C_out * C_in).astype(jnp.float32)
        b_arg = bias.reshape(C_out).astype(jnp.float32)
        w_spec = pl.BlockSpec(memory_space=pltpu.MemorySpace.SMEM)
        b_spec = pl.BlockSpec(memory_space=pltpu.MemorySpace.SMEM)
    else:
        kernel = functools.partial(_mxu_kernel, t_n)
        w_arg = weight.reshape(C_out, C_in).astype(dtype)
        b_arg = bias.reshape(C_out, 1).astype(jnp.float32)
        w_spec = pl.BlockSpec((C_out, C_in), lambda i, j: (0, 0))
        b_spec = pl.BlockSpec((C_out, 1), lambda i, j: (0, 0))

    out3d = pl.pallas_call(
        kernel,
        out_shape=jax.ShapeDtypeStruct((N, C_out, HW), dtype),
        grid_spec=pltpu.PrefetchScalarGridSpec(
            num_scalar_prefetch=0,
            grid=(n_blocks, hw_blocks),
            in_specs=[x_spec, w_spec, b_spec],
            out_specs=o_spec,
        ),
        compiler_params=pltpu.CompilerParams(
            dimension_semantics=("parallel", "parallel"),
            vmem_limit_bytes=32 * 1024 * 1024,
        ),
        cost_estimate=cost,
    )(x3d, w_arg, b_arg)

    return out3d.reshape(N, C_out, H, W)


def _ref_conv1x1(x, weight, bias):
    C_out, C_in = weight.shape[0], weight.shape[1]
    return (jnp.einsum("nchw,oc->nohw", x, weight.reshape(C_out, C_in))
            + bias[None, :, None, None])


if __name__ == "__main__":
    key = jax.random.PRNGKey(0)
    kx, kw, kb = jax.random.split(key, 3)

    # Main case: small UNet-style OutConv, VPU path.
    N, C_in, H, W = 2, 4, 16, 16
    C_out = 3

    x = jax.random.normal(kx, (N, C_in, H, W), dtype=jnp.float32)
    bound = 1.0 / jnp.sqrt(C_in * 1 * 1)
    weight = jax.random.uniform(kw, (C_out, C_in, 1, 1), jnp.float32, -bound, bound)
    bias = jax.random.uniform(kb, (C_out,), jnp.float32, -bound, bound)

    out = jax.block_until_ready(jax.jit(outconv)(x, weight, bias))
    ref = _ref_conv1x1(x, weight, bias)
    assert out.shape == (N, C_out, H, W)
    assert jnp.allclose(out, ref, atol=1e-5), "mismatch vs reference"

    # Non-128-aligned spatial dim (14x14): full-dim block, masked stores, no pad.
    x2 = jax.random.normal(kx, (1, C_in, 14, 14), dtype=jnp.float32)
    out2 = jax.block_until_ready(jax.jit(outconv)(x2, weight, bias))
    ref2 = _ref_conv1x1(x2, weight, bias)
    assert out2.shape == (1, C_out, 14, 14)
    assert jnp.allclose(out2, ref2, atol=1e-5), "mismatch vs reference (ragged path)"

    # Larger channel counts: MXU fallback path.
    kx3, kw3, kb3 = jax.random.split(jax.random.PRNGKey(1), 3)
    C_in3, C_out3 = 32, 16
    x3 = jax.random.normal(kx3, (1, C_in3, 8, 8), dtype=jnp.float32)
    b3 = 1.0 / jnp.sqrt(C_in3)
    w3 = jax.random.uniform(kw3, (C_out3, C_in3, 1, 1), jnp.float32, -b3, b3)
    bs3 = jax.random.uniform(kb3, (C_out3,), jnp.float32, -b3, b3)
    out3 = jax.block_until_ready(jax.jit(outconv)(x3, w3, bs3))
    ref3 = _ref_conv1x1(x3, w3, bs3)
    assert out3.shape == (1, C_out3, 8, 8)
    assert jnp.allclose(out3, ref3, atol=1e-4), "mismatch vs reference (MXU path)"

    print("KERNEL_OK")
</pallas_src>

<mosaic_0001>
module attributes {stable_mosaic.version = 11 : i64} {
  func.func @_vpu_kernel(%arg0: i32, %arg1: i32, %arg2: memref<1x4x256xf32, #tpu.memory_space<vmem>>, %arg3: memref<12xf32, #tpu.memory_space<smem>>, %arg4: memref<3xf32, #tpu.memory_space<smem>>, %arg5: memref<1x3x256xf32, #tpu.memory_space<vmem>>) attributes {dimension_semantics = [#tpu.dimension_semantics<parallel>, #tpu.dimension_semantics<parallel>], iteration_bounds = array<i64: 2, 1>, scalar_prefetch = 0 : i64, scratch_operands = 0 : i64, tpu.core_type = #tpu.core_type<tc>, window_params = [{transform_indices = @transform_0, window_bounds = array<i64: 1, 4, 256>}, {transform_indices = @transform_1, window_bounds = array<i64: 12>}, {transform_indices = @transform_2, window_bounds = array<i64: 3>}, {transform_indices = @transform_3, window_bounds = array<i64: 1, 3, 256>}]} {
    %c0 = arith.constant 0 : index
    %c0_0 = arith.constant 0 : index
    %c0_1 = arith.constant 0 : index
    %0 = vector.load %arg2[%c0, %c0_0, %c0_1] : memref<1x4x256xf32, #tpu.memory_space<vmem>>, vector<1x4x256xf32>
    %1 = vector.shape_cast %0 : vector<1x4x256xf32> to vector<4x256xf32>
    %cst = arith.constant 0.000000e+00 : f32
    %2 = vector.broadcast %cst : f32 to vector<1x256xf32>
    %c0_2 = arith.constant 0 : index
    %3 = memref.load %arg3[%c0_2] : memref<12xf32, #tpu.memory_space<smem>>
    %4 = vector.extract_strided_slice %1 {offsets = [0, 0], sizes = [1, 256], strides = [1, 1]} : vector<4x256xf32> to vector<1x256xf32>
    %5 = vector.broadcast %3 : f32 to vector<1x256xf32>
    %6 = arith.mulf %5, %4 : vector<1x256xf32>
    %7 = arith.addf %2, %6 : vector<1x256xf32>
    %c1 = arith.constant 1 : index
    %8 = memref.load %arg3[%c1] : memref<12xf32, #tpu.memory_space<smem>>
    %9 = vector.extract_strided_slice %1 {offsets = [1, 0], sizes = [1, 256], strides = [1, 1]} : vector<4x256xf32> to vector<1x256xf32>
    %10 = vector.broadcast %8 : f32 to vector<1x256xf32>
    %11 = arith.mulf %10, %9 : vector<1x256xf32>
    %12 = arith.addf %7, %11 : vector<1x256xf32>
    %c2 = arith.constant 2 : index
    %13 = memref.load %arg3[%c2] : memref<12xf32, #tpu.memory_space<smem>>
    %14 = vector.extract_strided_slice %1 {offsets = [2, 0], sizes = [1, 256], strides = [1, 1]} : vector<4x256xf32> to vector<1x256xf32>
    %15 = vector.broadcast %13 : f32 to vector<1x256xf32>
    %16 = arith.mulf %15, %14 : vector<1x256xf32>
    %17 = arith.addf %12, %16 : vector<1x256xf32>
    %c3 = arith.constant 3 : index
    %18 = memref.load %arg3[%c3] : memref<12xf32, #tpu.memory_space<smem>>
    %19 = vector.extract_strided_slice %1 {offsets = [3, 0], sizes = [1, 256], strides = [1, 1]} : vector<4x256xf32> to vector<1x256xf32>
    %20 = vector.broadcast %18 : f32 to vector<1x256xf32>
    %21 = arith.mulf %20, %19 : vector<1x256xf32>
    %22 = arith.addf %17, %21 : vector<1x256xf32>
    %c0_3 = arith.constant 0 : index
    %23 = memref.load %arg4[%c0_3] : memref<3xf32, #tpu.memory_space<smem>>
    %24 = vector.broadcast %23 : f32 to vector<1x256xf32>
    %25 = arith.addf %22, %24 : vector<1x256xf32>
    %cst_4 = arith.constant 0.000000e+00 : f32
    %26 = vector.broadcast %cst_4 : f32 to vector<1x256xf32>
    %c4 = arith.constant 4 : index
    %27 = memref.load %arg3[%c4] : memref<12xf32, #tpu.memory_space<smem>>
    %28 = vector.extract_strided_slice %1 {offsets = [0, 0], sizes = [1, 256], strides = [1, 1]} : vector<4x256xf32> to vector<1x256xf32>
    %29 = vector.broadcast %27 : f32 to vector<1x256xf32>
    %30 = arith.mulf %29, %28 : vector<1x256xf32>
    %31 = arith.addf %26, %30 : vector<1x256xf32>
    %c5 = arith.constant 5 : index
    %32 = memref.load %arg3[%c5] : memref<12xf32, #tpu.memory_space<smem>>
    %33 = vector.extract_strided_slice %1 {offsets = [1, 0], sizes = [1, 256], strides = [1, 1]} : vector<4x256xf32> to vector<1x256xf32>
    %34 = vector.broadcast %32 : f32 to vector<1x256xf32>
    %35 = arith.mulf %34, %33 : vector<1x256xf32>
    %36 = arith.addf %31, %35 : vector<1x256xf32>
    %c6 = arith.constant 6 : index
    %37 = memref.load %arg3[%c6] : memref<12xf32, #tpu.memory_space<smem>>
    %38 = vector.extract_strided_slice %1 {offsets = [2, 0], sizes = [1, 256], strides = [1, 1]} : vector<4x256xf32> to vector<1x256xf32>
    %39 = vector.broadcast %37 : f32 to vector<1x256xf32>
    %40 = arith.mulf %39, %38 : vector<1x256xf32>
    %41 = arith.addf %36, %40 : vector<1x256xf32>
    %c7 = arith.constant 7 : index
    %42 = memref.load %arg3[%c7] : memref<12xf32, #tpu.memory_space<smem>>
    %43 = vector.extract_strided_slice %1 {offsets = [3, 0], sizes = [1, 256], strides = [1, 1]} : vector<4x256xf32> to vector<1x256xf32>
    %44 = vector.broadcast %42 : f32 to vector<1x256xf32>
    %45 = arith.mulf %44, %43 : vector<1x256xf32>
    %46 = arith.addf %41, %45 : vector<1x256xf32>
    %c1_5 = arith.constant 1 : index
    %47 = memref.load %arg4[%c1_5] : memref<3xf32, #tpu.memory_space<smem>>
    %48 = vector.broadcast %47 : f32 to vector<1x256xf32>
    %49 = arith.addf %46, %48 : vector<1x256xf32>
    %cst_6 = arith.constant 0.000000e+00 : f32
    %50 = vector.broadcast %cst_6 : f32 to vector<1x256xf32>
    %c8 = arith.constant 8 : index
    %51 = memref.load %arg3[%c8] : memref<12xf32, #tpu.memory_space<smem>>
    %52 = vector.extract_strided_slice %1 {offsets = [0, 0], sizes = [1, 256], strides = [1, 1]} : vector<4x256xf32> to vector<1x256xf32>
    %53 = vector.broadcast %51 : f32 to vector<1x256xf32>
    %54 = arith.mulf %53, %52 : vector<1x256xf32>
    %55 = arith.addf %50, %54 : vector<1x256xf32>
    %c9 = arith.constant 9 : index
    %56 = memref.load %arg3[%c9] : memref<12xf32, #tpu.memory_space<smem>>
    %57 = vector.extract_strided_slice %1 {offsets = [1, 0], sizes = [1, 256], strides = [1, 1]} : vector<4x256xf32> to vector<1x256xf32>
    %58 = vector.broadcast %56 : f32 to vector<1x256xf32>
    %59 = arith.mulf %58, %57 : vector<1x256xf32>
    %60 = arith.addf %55, %59 : vector<1x256xf32>
    %c10 = arith.constant 10 : index
    %61 = memref.load %arg3[%c10] : memref<12xf32, #tpu.memory_space<smem>>
    %62 = vector.extract_strided_slice %1 {offsets = [2, 0], sizes = [1, 256], strides = [1, 1]} : vector<4x256xf32> to vector<1x256xf32>
    %63 = vector.broadcast %61 : f32 to vector<1x256xf32>
    %64 = arith.mulf %63, %62 : vector<1x256xf32>
    %65 = arith.addf %60, %64 : vector<1x256xf32>
    %c11 = arith.constant 11 : index
    %66 = memref.load %arg3[%c11] : memref<12xf32, #tpu.memory_space<smem>>
    %67 = vector.extract_strided_slice %1 {offsets = [3, 0], sizes = [1, 256], strides = [1, 1]} : vector<4x256xf32> to vector<1x256xf32>
    %68 = vector.broadcast %66 : f32 to vector<1x256xf32>
    %69 = arith.mulf %68, %67 : vector<1x256xf32>
    %70 = arith.addf %65, %69 : vector<1x256xf32>
    %c2_7 = arith.constant 2 : index
    %71 = memref.load %arg4[%c2_7] : memref<3xf32, #tpu.memory_space<smem>>
    %72 = vector.broadcast %71 : f32 to vector<1x256xf32>
    %73 = arith.addf %70, %72 : vector<1x256xf32>
    %74 = tpu.concatenate %25, %49, %73 in 0 : vector<1x256xf32>, vector<1x256xf32>, vector<1x256xf32> -> vector<3x256xf32>
    %c0_8 = arith.constant 0 : index
    %c0_9 = arith.constant 0 : index
    %c0_10 = arith.constant 0 : index
    %75 = vector.load %arg5[%c0_8, %c0_9, %c0_10] : memref<1x3x256xf32, #tpu.memory_space<vmem>>, vector<1x3x256xf32>
    %76 = vector.shape_cast %75 : vector<1x3x256xf32> to vector<3x256xf32>
    %77 = vector.shape_cast %74 : vector<3x256xf32> to vector<1x3x256xf32>
    tpu.vector_store %arg5[%c0_8, %c0_9, %c0_10], %77 {strides = array<i32>} : memref<1x3x256xf32, #tpu.memory_space<vmem>>, vector<1x3x256xf32>,
    return
  }
  func.func @transform_0(%arg0: i32, %arg1: i32) -> (i32, i32, i32) {
    %c0_i32 = arith.constant 0 : i32
    %c0_i32_0 = arith.constant 0 : i32
    return %arg0, %c0_i32, %arg1 : i32, i32, i32
  }
  func.func @transform_1(%arg0: i32, %arg1: i32) -> i32 {
    %c0_i32 = arith.constant 0 : i32
    %c0_i32_0 = arith.constant 0 : i32
    return %c0_i32 : i32
  }
  func.func @transform_2(%arg0: i32, %arg1: i32) -> i32 {
    %c0_i32 = arith.constant 0 : i32
    %c0_i32_0 = arith.constant 0 : i32
    return %c0_i32 : i32
  }
  func.func @transform_3(%arg0: i32, %arg1: i32) -> (i32, i32, i32) {
    %c0_i32 = arith.constant 0 : i32
    %c0_i32_0 = arith.constant 0 : i32
    return %arg0, %c0_i32, %arg1 : i32, i32, i32
  }
}

</mosaic_0001>

<llo_original>
// kernel: outconv.1
$region0: #{outconv.1}
  #allocation0 [shape = 'u32[]', space=smem, size = 0x4, offset = 0x4, fixed_abs, tag = 'smem constant byte address 0x4 - core index']
  #allocation1 [shape = 'u32[72,128]{1,0:T(1,128)}', space=vmem, size = 0x9000, scoped, tag = 'internal scratch']
  %s0 = inlined_call_operand.vmem [shape: f32[2,4,256], index: 0, kind: input, shape index: {}]
  %s1 = inlined_call_operand.vmem [shape: f32[12], index: 1, kind: input, shape index: {}]
  %s2 = inlined_call_operand.vmem [shape: f32[3], index: 2, kind: input, shape index: {}]
  %s3 = inlined_call_operand.vmem [shape: f32[2,3,256], index: 3, kind: output, shape index: {}]
  %s4 = sld [smem:[#allocation0]]
  $region53: #{outconv.1} parent=0
    _
  %s6 = ssub.s32 1, %s4
  %s7 = scalar_select 0, %s6, %s4
  $region1: #{outconv.1} parent=0
    #allocation2 [shape = 'u8[512]{0}', space=smem, size = 0x200, scoped, tag = 'input window, operand 1, single buffered']
    #allocation3 [shape = 's32[2]{0}', space=sflag, size = 0x8, scoped, tag = 'scoped memory for outconv.1']
    #allocation4 [shape = 'u8[512]{0}', space=smem, size = 0x200, scoped, tag = 'input window, operand 2, single buffered']
    #allocation5 [shape = 's32[1]{0}', space=sflag, size = 0x4, scoped, tag = 'scoped memory for outconv.1']
    %8 = vsyncpa [#allocation3], 0
    %9 = vsyncpa [#allocation5], 0
    loop: start=0, step=1, limit=4
    $region2: #{outconv.1} parent=1 // loop_pre_header
      _
    $region3: #{outconv.1} parent=1 // loop_header
      %s11 = sphi 0, %s15
      %p12 = scmp.ge.s32.totalorder %s11, 4
      %s18 = sphi 0, %s30
      %s19 = sphi 0, %s26
      %s20 = sphi 0, %s18
      %s21 = sphi 0, %s19
      %s22 = sphi 0, %s20
      %s23 = sphi 0, %s21
      %s35 = sphi 0, %s37
      %s38 = sphi 0, %s35
      %s39 = sphi 0, %s38
      %s55 = sphi 0, %s39
      %s59 = sphi 0, %s59
      %s61 = sphi 0, %s59
      %s62 = sphi 0, %s61
      %s76 = sphi 0, %s62
      %s80 = sphi 0, %s80
      %s82 = sphi 0, %s80
      %s83 = sphi 0, %s82
      %s97 = sphi 0, %s83
      %s105 = sphi 0, %s107
      %s108 = sphi 0, %s105
      %s109 = sphi 0, %s108
      %s125 = sphi 0, %s109
    $region4: #{outconv.1} parent=1 // loop_header_branch
      %14 = sbr.rel (%p12) target = $region8
    $region5: #{outconv.1} parent=1 // loop_body
      %s16 = ssub.s32 %s11, 1
      %s17 = ssub.s32 %s11, 2
      %s24 = sadd.s32 1, %s19
      %p25 = scmp.ge.s32.totalorder %s24, 1
      %s26 = scalar_select %p25, 0, %s24
      %s27 = sadd.s32 1, %s18
      %s28 = scalar_select %p25, %s27, %s18
      %p29 = scmp.ge.s32.totalorder %s28, 2
      %s30 = scalar_select %p29, 0, %s28
      %s31 = ssub.s32 %s18, %s30
      %s32 = ssub.s32 %s19, %s26
      %s33 = sor.u32 %s31, %s32
      %p34 = scmp.eq.s32.totalorder %s33, 0
      %s36 = sadd.s32 %s35, 1
      %s37 = scalar_select %p34, %s35, %s36
      %p40 = pneg %p34
      %p41 = scmp.eq.s32.totalorder %s11, 1
      %p42 = por %p40, %p41
      %p43 = scmp.ne.s32.totalorder %s35, %s38
      %p44 = scmp.eq.s32.totalorder %s11, 0
      %p45 = por %p43, %p44
      %p46 = scmp.ne.s32.totalorder %s35, %s38
      %p47 = scmp.eq.s32.totalorder %s16, 1
      %p48 = por %p46, %p47
      %p49 = scmp.ne.s32.totalorder %s38, %s39
      %p50 = scmp.eq.s32.totalorder %s16, 0
      %p51 = por %p49, %p50
      %p52 = scmp.ne.s32.totalorder %s38, %s39
      %p53 = scmp.eq.s32.totalorder %s17, 1
      %p54 = por %p52, %p53
      %p56 = scmp.ne.s32.totalorder %s39, %s55
      %p57 = scmp.eq.s32.totalorder %s17, 0
      %p58 = por %p56, %p57
      %s60 = sadd.s32 %s59, 1
      %p63 = scmp.eq.s32.totalorder %s11, 1
      %p64 = scmp.ne.s32.totalorder %s59, %s61
      %p65 = scmp.eq.s32.totalorder %s11, 0
      %p66 = por %p64, %p65
      %p67 = scmp.ne.s32.totalorder %s59, %s61
      %p68 = scmp.eq.s32.totalorder %s16, 1
      %p69 = por %p67, %p68
      %p70 = scmp.ne.s32.totalorder %s61, %s62
      %p71 = scmp.eq.s32.totalorder %s16, 0
      %p72 = por %p70, %p71
      %p73 = scmp.ne.s32.totalorder %s61, %s62
      %p74 = scmp.eq.s32.totalorder %s17, 1
      %p75 = por %p73, %p74
      %p77 = scmp.ne.s32.totalorder %s62, %s76
      %p78 = scmp.eq.s32.totalorder %s17, 0
      %p79 = por %p77, %p78
      %s81 = sadd.s32 %s80, 1
      %p84 = scmp.eq.s32.totalorder %s11, 1
      %p85 = scmp.ne.s32.totalorder %s80, %s82
      %p86 = scmp.eq.s32.totalorder %s11, 0
      %p87 = por %p85, %p86
      %p88 = scmp.ne.s32.totalorder %s80, %s82
      %p89 = scmp.eq.s32.totalorder %s16, 1
      %p90 = por %p88, %p89
      %p91 = scmp.ne.s32.totalorder %s82, %s83
      %p92 = scmp.eq.s32.totalorder %s16, 0
      %p93 = por %p91, %p92
      %p94 = scmp.ne.s32.totalorder %s82, %s83
      %p95 = scmp.eq.s32.totalorder %s17, 1
      %p96 = por %p94, %p95
      %p98 = scmp.ne.s32.totalorder %s83, %s97
      %p99 = scmp.eq.s32.totalorder %s17, 0
      %p100 = por %p98, %p99
      %s101 = ssub.s32 %s18, %s30
      %s102 = ssub.s32 %s19, %s26
      %s103 = sor.u32 %s101, %s102
      %p104 = scmp.eq.s32.totalorder %s103, 0
      %s106 = sadd.s32 %s105, 1
      %s107 = scalar_select %p104, %s105, %s106
      %p110 = pneg %p104
      %p111 = scmp.eq.s32.totalorder %s11, 1
      %p112 = por %p110, %p111
      %p113 = scmp.ne.s32.totalorder %s105, %s108
      %p114 = scmp.eq.s32.totalorder %s11, 0
      %p115 = por %p113, %p114
      %p116 = scmp.ne.s32.totalorder %s105, %s108
      %p117 = scmp.eq.s32.totalorder %s16, 1
      %p118 = por %p116, %p117
      %p119 = scmp.ne.s32.totalorder %s108, %s109
      %p120 = scmp.eq.s32.totalorder %s16, 0
      %p121 = por %p119, %p120
      %p122 = scmp.ne.s32.totalorder %s108, %s109
      %p123 = scmp.eq.s32.totalorder %s17, 1
      %p124 = por %p122, %p123
      %p126 = scmp.ne.s32.totalorder %s109, %s125
      %p127 = scmp.eq.s32.totalorder %s17, 0
      %p128 = por %p126, %p127
      %p129 = scmp.le.s32.totalorder 1, %s11
      %p130 = scmp.lt.s32.totalorder %s11, 3
      %p131 = pnand %p129, %p130
      %p132 = pneg %p131
      // Predicated region
      $region9: #{outconv.1} parent=5 // pred_check
        _
      $region10: #{outconv.1} parent=5 // pred_check_branch
        %134 = sbr.rel (%p131) target = $region12
      $region11: #{outconv.1} parent=5 // pred_region
        %s135 = ssub.s32 %s11, 1
        // Predicated region
        $region13: #{outconv.1} parent=11 // pred_check
          %p136 = pneg %p72
        $region14: #{outconv.1} parent=11 // pred_check_branch
          %138 = sbr.rel (%p136) target = $region16
        $region15: #{outconv.1} parent=11 // pred_region
          %140 = vsyncadd [#allocation3], 0
          %s142 = sshll.u32 %s1, 4
          %s143 = int_to_ptr.vmem [resolvable:$true] %s142
          %145 = dma.vmem_to_smem %s143, 16, [#allocation2], [#allocation3]
        $region16: #{outconv.1} parent=11 // pred_fallthru
          _
        // Predicated region
        $region17: #{outconv.1} parent=11 // pred_check
          %p146 = pneg %p93
        $region18: #{outconv.1} parent=11 // pred_check_branch
          %148 = sbr.rel (%p146) target = $region20
        $region19: #{outconv.1} parent=11 // pred_region
          %150 = vsyncadd [#allocation5], 0
          %s152 = sshll.u32 %s2, 4
          %s153 = int_to_ptr.vmem [resolvable:$true] %s152
          %155 = dma.vmem_to_smem %s153, 16, [#allocation4], [#allocation5]
        $region20: #{outconv.1} parent=11 // pred_fallthru
          _
      $region12: #{outconv.1} parent=5 // pred_fallthru
        _
      %p156 = scmp.lt.s32.totalorder %s11, 2
      // Predicated region
      $region21: #{outconv.1} parent=5 // pred_check
        %p157 = pneg %p156
      $region22: #{outconv.1} parent=5 // pred_check_branch
        %159 = sbr.rel (%p157) target = $region24
      $region23: #{outconv.1} parent=5 // pred_region
        // Predicated region
        $region25: #{outconv.1} parent=23 // pred_check
          %p160 = pneg %p45
        $region26: #{outconv.1} parent=23 // pred_check_branch
          %162 = sbr.rel (%p160) target = $region28
        $region27: #{outconv.1} parent=23 // pred_region
          %s163 = smul.u32 2, %s19
          %p164 = scmp.lt.s32.totalorder %s18, 1
          %s165 = scalar_select %p164, %s18, 1
          %p166 = scmp.lt.s32.totalorder %s163, 1
          %s167 = scalar_select %p166, %s163, 1
          %s168 = smul.addr %s165, 2
          %s169 = sadd.s32 %s167, %s168
          %s170 = smul.addr %s169, 4
          %s171 = scalar_lea.vmem %s0, %s170
          %s172 = smul.u32 2, %s19
        $region28: #{outconv.1} parent=23 // pred_fallthru
          _
      $region24: #{outconv.1} parent=5 // pred_fallthru
        _
      %p173 = scmp.le.s32.totalorder 1, %s11
      %p174 = scmp.lt.s32.totalorder %s11, 3
      %p175 = pnand %p173, %p174
      %p176 = pneg %p175
      // Predicated region
      $region29: #{outconv.1} parent=5 // pred_check
        _
      $region30: #{outconv.1} parent=5 // pred_check_branch
        %178 = sbr.rel (%p175) target = $region32
      $region31: #{outconv.1} parent=5 // pred_region
        %s179 = ssub.s32 %s11, 1
        // Predicated region
        $region33: #{outconv.1} parent=31 // pred_check
          %p180 = pneg %p72
        $region34: #{outconv.1} parent=31 // pred_check_branch
          %182 = sbr.rel (%p180) target = $region36
        $region35: #{outconv.1} parent=31 // pred_region
          %184 = dma.done [#allocation3], 16
        $region36: #{outconv.1} parent=31 // pred_fallthru
          _
        // Predicated region
        $region37: #{outconv.1} parent=31 // pred_check
          %p185 = pneg %p93
        $region38: #{outconv.1} parent=31 // pred_check_branch
          %187 = sbr.rel (%p185) target = $region40
        $region39: #{outconv.1} parent=31 // pred_region
          %189 = dma.done [#allocation5], 16
        $region40: #{outconv.1} parent=31 // pred_fallthru
          _
        %190 = sfence
        %s191 = smul.u32 2, %s21
        %p192 = scmp.lt.s32.totalorder %s20, 1
        %s193 = scalar_select %p192, %s20, 1
        %p194 = scmp.lt.s32.totalorder %s191, 1
        %s195 = scalar_select %p194, %s191, 1
        %s196 = smul.addr %s193, 2
        %s197 = sadd.s32 %s195, %s196
        %s198 = smul.addr %s197, 4
        %s199 = scalar_lea.vmem %s0, %s198
        %p200 = pneg %p51
        %p201 = pneg %p48
        %p202 = pneg %p72
        %p203 = pneg %p69
        %p204 = pneg %p93
        %p205 = pneg %p90
        %p206 = pneg %p121
        %p207 = pneg %p118
        %s208 = smul.u32 2, %s21
        %p209 = scmp.lt.s32.totalorder %s20, 1
        %s210 = scalar_select %p209, %s20, 1
        %p211 = scmp.lt.s32.totalorder %s208, 1
        %s212 = scalar_select %p211, %s208, 1
        %s213 = smul.addr %s210, 2
        %s214 = sadd.s32 %s212, %s213
        %s215 = smul.addr %s214, 4
        %s216 = scalar_lea.vmem %s3, %s215
        %s217 = smul.u32 2, %s21
        %p218 = scmp.lt.s32.totalorder %s20, 1
        %s219 = scalar_select %p218, %s20, 1
        %p220 = scmp.lt.s32.totalorder %s217, 1
        %s221 = scalar_select %p220, %s217, 1
        %s222 = smul.addr %s219, 2
        %s223 = sadd.s32 %s221, %s222
        %s224 = smul.addr %s223, 4
        %s225 = scalar_lea.vmem %s0, %s224
        %s226 = smul.u32 2, %s21
        %s227 = smul.u32 2, %s21
        %p228 = scmp.lt.s32.totalorder %s20, 1
        %s229 = scalar_select %p228, %s20, 1
        %p230 = scmp.lt.s32.totalorder %s227, 1
        %s231 = scalar_select %p230, %s227, 1
        %s232 = smul.addr %s229, 2
        %s233 = sadd.s32 %s231, %s232
        %s234 = smul.addr %s233, 4
        %s235 = scalar_lea.vmem %s3, %s234
        %s236 = smul.u32 2, %s21
        %v237 = vld [vmem:[%s225] sm:$0xff]
        %s238 = sld [smem:[#allocation2]]
        %v239 = vstv %s238
        %v240 = vmul.f32 %v239, %v237
        %v241 = vadd.f32 %v240, 0.0
        %s242 = sld [smem:[#allocation2 + $0x1]]
        %v243 = vstv %s242
        %v244 = vmul.f32 %v243, %v237
        %v246 = vrot.slane %v244, 5
        %v247 = vrot.slane %v246, 4
        %v249 = vadd.f32 %v241, %v247
        %s250 = sld [smem:[#allocation2 + $0x2]]
        %v251 = vstv %s250
        %v252 = vmul.f32 %v251, %v237
        %v254 = vrot.slane %v252, 6
        %v255 = vrot.slane %v254, 4
        %v257 = vadd.f32 %v249, %v255
        %s258 = sld [smem:[#allocation2 + $0x3]]
        %v259 = vstv %s258
        %v260 = vmul.f32 %v259, %v237
        %v262 = vrot.slane %v260, 7
        %v263 = vrot.slane %v262, 4
        %v265 = vadd.f32 %v257, %v263
        %s266 = sld [smem:[#allocation4]]
        %v267 = vstv %s266
        %v268 = vadd.f32 %v265, %v267
        %s269 = sld [smem:[#allocation2 + $0x4]]
        %v270 = vstv %s269
        %v271 = vmul.f32 %v270, %v237
        %v272 = vadd.f32 %v271, 0.0
        %s273 = sld [smem:[#allocation2 + $0x5]]
        %v274 = vstv %s273
        %v275 = vmul.f32 %v274, %v237
        %v277 = vrot.slane %v275, 5
        %v278 = vrot.slane %v277, 4
        %v280 = vadd.f32 %v272, %v278
        %s281 = sld [smem:[#allocation2 + $0x6]]
        %v282 = vstv %s281
        %v283 = vmul.f32 %v282, %v237
        %v285 = vrot.slane %v283, 6
        %v286 = vrot.slane %v285, 4
        %v288 = vadd.f32 %v280, %v286
        %s289 = sld [smem:[#allocation2 + $0x7]]
        %v290 = vstv %s289
        %v291 = vmul.f32 %v290, %v237
        %v293 = vrot.slane %v291, 7
        %v294 = vrot.slane %v293, 4
        %v296 = vadd.f32 %v288, %v294
        %s297 = sld [smem:[#allocation4 + $0x1]]
        %v298 = vstv %s297
        %v299 = vadd.f32 %v296, %v298
        %s300 = sld [smem:[#allocation2 + $0x8]]
        %v301 = vstv %s300
        %v302 = vmul.f32 %v301, %v237
        %v303 = vadd.f32 %v302, 0.0
        %s304 = sld [smem:[#allocation2 + $0x9]]
        %v305 = vstv %s304
        %v306 = vmul.f32 %v305, %v237
        %v308 = vrot.slane %v306, 5
        %v309 = vrot.slane %v308, 4
        %v311 = vadd.f32 %v303, %v309
        %s312 = sld [smem:[#allocation2 + $0xa]]
        %v313 = vstv %s312
        %v314 = vmul.f32 %v313, %v237
        %v316 = vrot.slane %v314, 6
        %v317 = vrot.slane %v316, 4
        %v319 = vadd.f32 %v311, %v317
        %s320 = sld [smem:[#allocation2 + $0xb]]
        %v321 = vstv %s320
        %v322 = vmul.f32 %v321, %v237
        %v324 = vrot.slane %v322, 7
        %v325 = vrot.slane %v324, 4
        %v327 = vadd.f32 %v319, %v325
        %s328 = sld [smem:[#allocation4 + $0x2]]
        %v329 = vstv %s328
        %v330 = vadd.f32 %v327, %v329
        %v332 = vperm.slane %v268, 0
        %v333 = vperm.slane %v268, 4
        %v337 = vperm.slane %v299, 0
        %v338 = vperm.slane %v299, 4
        %v342 = vperm.slane %v330, 0
        %v343 = vperm.slane %v330, 4
        %vm346 = vcmask 1040384
        %v347 = vsel %vm346, %v332, %v337
        %v348 = vsel %vm346, %v333, %v338
        %vm349 = vcmask 1041408
        %v350 = vsel %vm349, %v347, %v342
        %v351 = vsel %vm349, %v348, %v343
        %v354 = vrot.slane %v351, 4
        %vm355 = vcmask 1043456
        %v356 = vsel %vm355, %v350, %v354
        %358 = vst [vmem:[%s235] sm:$0x77] %v356
        %s359 = smul.u32 2, %s21
        %p360 = scmp.lt.s32.totalorder %s20, 1
        %s361 = scalar_select %p360, %s20, 1
        %p362 = scmp.lt.s32.totalorder %s359, 1
        %s363 = scalar_select %p362, %s359, 1
        %s364 = smul.addr %s361, 2
        %s365 = sadd.s32 %s363, %s364
        %s366 = smul.addr %s365, 4
        %s367 = scalar_lea.vmem %s3, %s366
        // Predicated region
        $region41: #{outconv.1} parent=31 // pred_check
          %p368 = pneg %p118
        $region42: #{outconv.1} parent=31 // pred_check_branch
          %370 = sbr.rel (%p368) target = $region44
        $region43: #{outconv.1} parent=31 // pred_region
          %s371 = smul.u32 2, %s21
        $region44: #{outconv.1} parent=31 // pred_fallthru
          _
      $region32: #{outconv.1} parent=5 // pred_fallthru
        _
      %p372 = scmp.le.s32.totalorder 2, %s11
      // Predicated region
      $region45: #{outconv.1} parent=5 // pred_check
        %p373 = pneg %p372
      $region46: #{outconv.1} parent=5 // pred_check_branch
        %375 = sbr.rel (%p373) target = $region48
      $region47: #{outconv.1} parent=5 // pred_region
        %s376 = ssub.s32 %s11, 2
        // Predicated region
        $region49: #{outconv.1} parent=47 // pred_check
          %p377 = pneg %p124
        $region50: #{outconv.1} parent=47 // pred_check_branch
          %379 = sbr.rel (%p377) target = $region52
        $region51: #{outconv.1} parent=47 // pred_region
          %s380 = smul.u32 2, %s23
          %p381 = scmp.lt.s32.totalorder %s22, 1
          %s382 = scalar_select %p381, %s22, 1
          %p383 = scmp.lt.s32.totalorder %s380, 1
          %s384 = scalar_select %p383, %s380, 1
          %s385 = smul.addr %s382, 2
          %s386 = sadd.s32 %s384, %s385
          %s387 = smul.addr %s386, 4
          %s388 = scalar_lea.vmem %s3, %s387
        $region52: #{outconv.1} parent=47 // pred_fallthru
          _
      $region48: #{outconv.1} parent=5 // pred_fallthru
        _
    $region6: #{outconv.1} parent=1 // loop_footer
      %s15 = sadd.s32 1, %s11
    $region7: #{outconv.1} parent=1 // loop_footer_branch
      %10 = sbr.rel target = $region3
    $region8: #{outconv.1} parent=1 // loop_exit
      _
    %389 = vsyncpa [#allocation3], 1
    %s390 = scalar_lea.sflag [#allocation3], 1
    %391 = vsyncpa %s390, 1
    %392 = vsyncpa [#allocation5], 1

</llo_original>
